<compile_context>
chip_gen: v6e
topology: v6e:2x2x1
jax: 0.10.0
libtpu: 0.0.40
codegen_flags: <defaults>
</compile_context>

<pallas_src>
import functools
import math

import jax
import jax.numpy as jnp
from jax.experimental import pallas as pl
from jax.experimental.pallas import tpu as pltpu


# ----------------------------- configuration --------------------------------
B = 8                # batch (demo size; real use should batch >=128 rows per call)
IN_FEATURES = 128    # in_features
OUT_FEATURES = 256   # out_features
S_SCALE = 30.0       # s (AddMarginProduct default)
M_MARGIN = 0.4       # m (AddMarginProduct default)
EPS = 1e-12          # F.normalize eps


# ------------------------------- Pallas kernel -------------------------------
def add_margin_kernel(x_ref, w_ref, lab_ref, out_ref, *, s, m, mxu_dtype):
    """Whole AddMarginProduct head in one step.

    x_ref   : (B, D)  input features (NOT normalized -- matches the reference)
    w_ref   : (N, D)  raw weight rows
    lab_ref : (B, 1)  int32 labels
    out_ref : (B, N)  scaled margin logits
    """
    w_f32 = w_ref[...].astype(jnp.float32)

    # 1/||w_row||: single EUP rsqrt, F.normalize eps semantics preserved since
    # max(||w||, eps) == sqrt(max(||w||^2, eps^2)).
    w_sq = jnp.sum(w_f32 * w_f32, axis=-1, keepdims=True)        # (N, 1)
    inv_wn = jax.lax.rsqrt(jnp.maximum(w_sq, EPS * EPS))         # (N, 1)

    # Fold normalization and the scale s onto the weight rows pre-matmul.
    # (N,1) broadcast over (N,D) is a lane-splat -> no relayout onto the (B,N)
    # result; the extra multiply hides under the MXU weight push.
    w_scaled = (w_f32 * (s * inv_wn)).astype(mxu_dtype)          # (N, D)
    x = x_ref[...].astype(mxu_dtype)                             # (B, D)

    # s*cosine = x @ (s * normalize(w)).T ; contract dim 1 of both operands so the
    # MXU eats the weight directly in (N, D) layout (no transpose).
    s_cos = jax.lax.dot_general(
        x, w_scaled,
        dimension_numbers=(((1,), (1,)), ((), ())),
        preferred_element_type=jnp.float32)                      # (B, N)

    # s*(one_hot*(cos-m) + (1-one_hot)*cos) == s*cos - one_hot*(s*m):
    # one iota-compare + masked subtraction.
    col = jax.lax.broadcasted_iota(jnp.int32, s_cos.shape, dimension=1)
    is_target = col == lab_ref[...]                              # (B,1) -> (B,N)
    out_ref[...] = (s_cos - jnp.where(is_target, jnp.float32(s * m),
                                      jnp.float32(0.0))).astype(out_ref.dtype)


def add_margin_product(inputs, weight, labels, *, s=S_SCALE, m=M_MARGIN,
                       mxu_dtype=jnp.float32):
    """inputs: (B, D) f32, weight: (N, D) f32, labels: (B,) int -> (B, N) f32."""
    b, d = inputs.shape
    n, d2 = weight.shape
    assert d == d2, (d, d2)
    # Labels stay a tiny (B, 1) int32 VMEM operand (an SMEM path would need a
    # per-row scalar loop and only saves a ~32 B DMA).
    labels2d = labels.astype(jnp.int32).reshape(b, 1)
    kernel = functools.partial(add_margin_kernel, s=float(s), m=float(m),
                               mxu_dtype=mxu_dtype)
    # Single step: no grid, all operands resident in VMEM, lane-dense output.
    return pl.pallas_call(
        kernel,
        out_shape=jax.ShapeDtypeStruct((b, n), jnp.float32),
        in_specs=[
            pl.BlockSpec(memory_space=pltpu.MemorySpace.VMEM),   # inputs  (B, D)
            pl.BlockSpec(memory_space=pltpu.MemorySpace.VMEM),   # weight  (N, D)
            pl.BlockSpec(memory_space=pltpu.MemorySpace.VMEM),   # labels  (B, 1)
        ],
        out_specs=pl.BlockSpec(memory_space=pltpu.MemorySpace.VMEM),
    )(inputs, weight, labels2d)


# ------------------------------ reference (JAX) -------------------------------
def add_margin_reference(inputs, weight, labels, *, s=S_SCALE, m=M_MARGIN):
    wn = weight / jnp.maximum(
        jnp.linalg.norm(weight, axis=-1, keepdims=True), EPS)
    cosine = inputs @ wn.T
    phi = cosine - m
    onehot = jax.nn.one_hot(labels, weight.shape[0], dtype=jnp.float32)
    return (onehot * phi + (1.0 - onehot) * cosine) * s


if __name__ == "__main__":
    key = jax.random.PRNGKey(0)
    kx, kw, kl = jax.random.split(key, 3)

    # xavier_uniform_ init for the weight (bound = sqrt(6 / (fan_in + fan_out))).
    bound = math.sqrt(6.0 / (IN_FEATURES + OUT_FEATURES))
    weight = jax.random.uniform(kw, (OUT_FEATURES, IN_FEATURES), jnp.float32,
                                minval=-bound, maxval=bound)
    inputs = jax.random.normal(kx, (B, IN_FEATURES), jnp.float32)
    labels = jax.random.randint(kl, (B,), 0, OUT_FEATURES, jnp.int32)

    ref = add_margin_reference(inputs, weight, labels)

    # f32 MXU path (default): must match the f32 reference tightly.
    out = jax.block_until_ready(add_margin_product(inputs, weight, labels))
    assert out.shape == (B, OUT_FEATURES), out.shape
    assert jnp.allclose(out, ref, atol=2e-3, rtol=2e-3), float(
        jnp.max(jnp.abs(out - ref)))

    # bf16 MXU-input path (halves the weight DMA, bf16-native MXU): gated on a
    # looser tolerance since the input is unnormalized (logits ~ O(s)).
    out_bf16 = jax.block_until_ready(
        add_margin_product(inputs, weight, labels, mxu_dtype=jnp.bfloat16))
    assert jnp.allclose(out_bf16, ref, atol=0.5, rtol=2e-2), float(
        jnp.max(jnp.abs(out_bf16 - ref)))

    print("KERNEL_OK")
</pallas_src>

<mosaic_0001>
module attributes {stable_mosaic.version = 11 : i64} {
  func.func @add_margin_kernel(%arg0: memref<8x128xf32, #tpu.memory_space<vmem>>, %arg1: memref<256x128xf32, #tpu.memory_space<vmem>>, %arg2: memref<8x1xi32, #tpu.memory_space<vmem>>, %arg3: memref<8x256xf32, #tpu.memory_space<vmem>>) attributes {dimension_semantics = [], scalar_prefetch = 0 : i64, scratch_operands = 0 : i64, tpu.core_type = #tpu.core_type<tc>} {
    %c0 = arith.constant 0 : index
    %c0_0 = arith.constant 0 : index
    %0 = vector.load %arg1[%c0, %c0_0] : memref<256x128xf32, #tpu.memory_space<vmem>>, vector<256x128xf32>
    %1 = arith.mulf %0, %0 : vector<256x128xf32>
    %cst = arith.constant dense<0.000000e+00> : vector<256xf32>
    %2 = vector.multi_reduction <add>, %1, %cst [1] : vector<256x128xf32> to vector<256xf32>
    %3 = vector.shape_cast %2 : vector<256xf32> to vector<256x1xf32>
    %cst_1 = arith.constant 1.000000e-24 : f32
    %4 = vector.broadcast %cst_1 : f32 to vector<256x1xf32>
    %5 = arith.maximumf %3, %4 : vector<256x1xf32>
    %6 = math.rsqrt %5 : vector<256x1xf32>
    %cst_2 = arith.constant 3.000000e+01 : f32
    %7 = vector.broadcast %cst_2 : f32 to vector<256x1xf32>
    %8 = arith.mulf %7, %6 : vector<256x1xf32>
    %9 = vector.broadcast %8 : vector<256x1xf32> to vector<256x128xf32>
    %10 = arith.mulf %0, %9 : vector<256x128xf32>
    %c0_3 = arith.constant 0 : index
    %c0_4 = arith.constant 0 : index
    %11 = vector.load %arg0[%c0_3, %c0_4] : memref<8x128xf32, #tpu.memory_space<vmem>>, vector<8x128xf32>
    %cst_5 = arith.constant dense<0.000000e+00> : vector<8x256xf32>
    %12 = tpu.matmul %11, %10, %cst_5 {dimension_numbers = #tpu.dot_dimension_numbers<[1], [1], [0], [0], [0, 0, 1, 0], [], []>} : vector<8x128xf32>, vector<256x128xf32>, vector<8x256xf32> -> vector<8x256xf32>
    %13 = tpu.iota {dimensions = array<i32: 1>} : vector<8x256xi32>
    %c0_6 = arith.constant 0 : index
    %c0_7 = arith.constant 0 : index
    %14 = vector.load %arg2[%c0_6, %c0_7] : memref<8x1xi32, #tpu.memory_space<vmem>>, vector<8x1xi32>
    %15 = vector.broadcast %14 : vector<8x1xi32> to vector<8x256xi32>
    %16 = arith.cmpi eq, %13, %15 : vector<8x256xi32>
    %cst_8 = arith.constant 1.200000e+01 : f32
    %cst_9 = arith.constant 0.000000e+00 : f32
    %17 = vector.broadcast %cst_8 : f32 to vector<8x256xf32>
    %18 = vector.broadcast %cst_9 : f32 to vector<8x256xf32>
    %19 = arith.select %16, %17, %18 : vector<8x256xi1>, vector<8x256xf32>
    %20 = arith.subf %12, %19 : vector<8x256xf32>
    %c0_10 = arith.constant 0 : index
    %c0_11 = arith.constant 0 : index
    %21 = vector.load %arg3[%c0_10, %c0_11] : memref<8x256xf32, #tpu.memory_space<vmem>>, vector<8x256xf32>
    tpu.vector_store %arg3[%c0_10, %c0_11], %20 {strides = array<i32>} : memref<8x256xf32, #tpu.memory_space<vmem>>, vector<8x256xf32>,
    return
  }
}

</mosaic_0001>

<llo_original>
// kernel: tpu_custom_call.1
$region0: #{tpu_custom_call.1}
  #allocation0 [shape = 'u32[]', space=smem, size = 0x4, offset = 0x4, fixed_abs, tag = 'smem constant byte address 0x4 - core index']
  #allocation1 [shape = 'u32[144,128]{1,0:T(1,128)}', space=vmem, size = 0x12000, scoped, tag = 'internal scratch']
  %s0 = inlined_call_operand.vmem [shape: f32[8,128], index: 0, kind: input, shape index: {}]
  %s1 = inlined_call_operand.hbm [shape: f32[256,128], index: 1, kind: input, shape index: {}]
  %s2 = inlined_call_operand.vmem [shape: s32[8,1], index: 2, kind: input, shape index: {}]
  %s3 = inlined_call_operand.hbm [shape: f32[8,256], index: 3, kind: output, shape index: {}]
  %s4 = sld [smem:[#allocation0]]
  $region26: #{tpu_custom_call.1} parent=0
    _
  %s6 = ssub.s32 1, %s4
  %s7 = scalar_select 0, %s6, %s4
  $region1: #{tpu_custom_call.1} parent=0
    #allocation2 [shape = 'u8[131072]{0}', space=vmem, size = 0x20000, scoped, tag = 'input window, operand 1, single buffered']
    #allocation3 [shape = 's32[1]{0}', space=sflag, size = 0x4, scoped, tag = 'scoped memory for tpu_custom_call.1']
    #allocation4 [shape = 's32[1]{0}', space=sflag, size = 0x4, scoped, tag = 'scoped memory for tpu_custom_call.1']
    #allocation5 [shape = 'u8[8192]{0}', space=vmem, size = 0x2000, scoped, tag = 'output window, operand 0, single buffered']
    %8 = vsyncpa [#allocation3], 0
    %9 = vsyncpa [#allocation4], 0
    // Predicated region
    $region2: #{tpu_custom_call.1} parent=1 // pred_check
      _
    $region3: #{tpu_custom_call.1} parent=1 // pred_check_branch
      %11 = sbr.rel (0) target = $region5
    $region4: #{tpu_custom_call.1} parent=1 // pred_region
      _
    $region5: #{tpu_custom_call.1} parent=1 // pred_fallthru
      _
    // Predicated region
    $region6: #{tpu_custom_call.1} parent=1 // pred_check
      _
    $region7: #{tpu_custom_call.1} parent=1 // pred_check_branch
      %13 = sbr.rel (0) target = $region9
    $region8: #{tpu_custom_call.1} parent=1 // pred_region
      %s15 = ssub.s32 4096, 4096
      %16 = vsyncadd [#allocation3], %s15
      %s17 = sshll.u32 [#allocation2], 4
      %s18 = int_to_ptr.vmem [resolvable:$true] %s17
      %23 = dma.hbm_to_vmem [thread:$0]  %s1, 4096, %s18, [#allocation3], 128, 128, 8
    $region9: #{tpu_custom_call.1} parent=1 // pred_fallthru
      _
    // Predicated region
    $region10: #{tpu_custom_call.1} parent=1 // pred_check
      _
    $region11: #{tpu_custom_call.1} parent=1 // pred_check_branch
      %25 = sbr.rel (0) target = $region13
    $region12: #{tpu_custom_call.1} parent=1 // pred_region
      _
    $region13: #{tpu_custom_call.1} parent=1 // pred_fallthru
      _
    // Predicated region
    $region14: #{tpu_custom_call.1} parent=1 // pred_check
      _
    $region15: #{tpu_custom_call.1} parent=1 // pred_check_branch
      %27 = sbr.rel (0) target = $region17
    $region16: #{tpu_custom_call.1} parent=1 // pred_region
      %28 = dma.done [#allocation3], 4096
    $region17: #{tpu_custom_call.1} parent=1 // pred_fallthru
      _
    %v29 = vld [vmem:[#allocation2] sm:$0xff]
    %v30 = vld [vmem:[#allocation2 + $0x8] sm:$0xff]
    %v31 = vld [vmem:[#allocation2 + $0x10] sm:$0xff]
    %v32 = vld [vmem:[#allocation2 + $0x18] sm:$0xff]
    %v33 = vld [vmem:[#allocation2 + $0x20] sm:$0xff]
    %v34 = vld [vmem:[#allocation2 + $0x28] sm:$0xff]
    %v35 = vld [vmem:[#allocation2 + $0x30] sm:$0xff]
    %v36 = vld [vmem:[#allocation2 + $0x38] sm:$0xff]
    %v37 = vld [vmem:[#allocation2 + $0x40] sm:$0xff]
    %v38 = vld [vmem:[#allocation2 + $0x48] sm:$0xff]
    %v39 = vld [vmem:[#allocation2 + $0x50] sm:$0xff]
    %v40 = vld [vmem:[#allocation2 + $0x58] sm:$0xff]
    %v41 = vld [vmem:[#allocation2 + $0x60] sm:$0xff]
    %v42 = vld [vmem:[#allocation2 + $0x68] sm:$0xff]
    %v43 = vld [vmem:[#allocation2 + $0x70] sm:$0xff]
    %v44 = vld [vmem:[#allocation2 + $0x78] sm:$0xff]
    %v45 = vld [vmem:[#allocation2 + $0x80] sm:$0xff]
    %v46 = vld [vmem:[#allocation2 + $0x88] sm:$0xff]
    %v47 = vld [vmem:[#allocation2 + $0x90] sm:$0xff]
    %v48 = vld [vmem:[#allocation2 + $0x98] sm:$0xff]
    %v49 = vld [vmem:[#allocation2 + $0xa0] sm:$0xff]
    %v50 = vld [vmem:[#allocation2 + $0xa8] sm:$0xff]
    %v51 = vld [vmem:[#allocation2 + $0xb0] sm:$0xff]
    %v52 = vld [vmem:[#allocation2 + $0xb8] sm:$0xff]
    %v53 = vld [vmem:[#allocation2 + $0xc0] sm:$0xff]
    %v54 = vld [vmem:[#allocation2 + $0xc8] sm:$0xff]
    %v55 = vld [vmem:[#allocation2 + $0xd0] sm:$0xff]
    %v56 = vld [vmem:[#allocation2 + $0xd8] sm:$0xff]
    %v57 = vld [vmem:[#allocation2 + $0xe0] sm:$0xff]
    %v58 = vld [vmem:[#allocation2 + $0xe8] sm:$0xff]
    %v59 = vld [vmem:[#allocation2 + $0xf0] sm:$0xff]
    %v60 = vld [vmem:[#allocation2 + $0xf8] sm:$0xff]
    %v61 = vmul.f32 %v29, %v29
    %v62 = vmul.f32 %v30, %v30
    %v63 = vmul.f32 %v31, %v31
    %v64 = vmul.f32 %v32, %v32
    %v65 = vmul.f32 %v33, %v33
    %v66 = vmul.f32 %v34, %v34
    %v67 = vmul.f32 %v35, %v35
    %v68 = vmul.f32 %v36, %v36
    %v69 = vmul.f32 %v37, %v37
    %v70 = vmul.f32 %v38, %v38
    %v71 = vmul.f32 %v39, %v39
    %v72 = vmul.f32 %v40, %v40
    %v73 = vmul.f32 %v41, %v41
    %v74 = vmul.f32 %v42, %v42
    %v75 = vmul.f32 %v43, %v43
    %v76 = vmul.f32 %v44, %v44
    %v77 = vmul.f32 %v45, %v45
    %v78 = vmul.f32 %v46, %v46
    %v79 = vmul.f32 %v47, %v47
    %v80 = vmul.f32 %v48, %v48
    %v81 = vmul.f32 %v49, %v49
    %v82 = vmul.f32 %v50, %v50
    %v83 = vmul.f32 %v51, %v51
    %v84 = vmul.f32 %v52, %v52
    %v85 = vmul.f32 %v53, %v53
    %v86 = vmul.f32 %v54, %v54
    %v87 = vmul.f32 %v55, %v55
    %v88 = vmul.f32 %v56, %v56
    %v89 = vmul.f32 %v57, %v57
    %v90 = vmul.f32 %v58, %v58
    %v91 = vmul.f32 %v59, %v59
    %v92 = vmul.f32 %v60, %v60
    %93 = vadd.xlane.f32.xlu0 %v61
    %v94 = vpop.xlane.xlu0 %93
    %95 = vadd.xlane.f32.xlu0 %v62
    %v96 = vpop.xlane.xlu0 %95
    %97 = vadd.xlane.f32.xlu0 %v63
    %v98 = vpop.xlane.xlu0 %97
    %99 = vadd.xlane.f32.xlu0 %v64
    %v100 = vpop.xlane.xlu0 %99
    %101 = vadd.xlane.f32.xlu0 %v65
    %v102 = vpop.xlane.xlu0 %101
    %103 = vadd.xlane.f32.xlu0 %v66
    %v104 = vpop.xlane.xlu0 %103
    %105 = vadd.xlane.f32.xlu0 %v67
    %v106 = vpop.xlane.xlu0 %105
    %107 = vadd.xlane.f32.xlu0 %v68
    %v108 = vpop.xlane.xlu0 %107
    %109 = vadd.xlane.f32.xlu0 %v69
    %v110 = vpop.xlane.xlu0 %109
    %111 = vadd.xlane.f32.xlu0 %v70
    %v112 = vpop.xlane.xlu0 %111
    %113 = vadd.xlane.f32.xlu0 %v71
    %v114 = vpop.xlane.xlu0 %113
    %115 = vadd.xlane.f32.xlu0 %v72
    %v116 = vpop.xlane.xlu0 %115
    %117 = vadd.xlane.f32.xlu0 %v73
    %v118 = vpop.xlane.xlu0 %117
    %119 = vadd.xlane.f32.xlu0 %v74
    %v120 = vpop.xlane.xlu0 %119
    %121 = vadd.xlane.f32.xlu0 %v75
    %v122 = vpop.xlane.xlu0 %121
    %123 = vadd.xlane.f32.xlu0 %v76
    %v124 = vpop.xlane.xlu0 %123
    %125 = vadd.xlane.f32.xlu0 %v77
    %v126 = vpop.xlane.xlu0 %125
    %127 = vadd.xlane.f32.xlu0 %v78
    %v128 = vpop.xlane.xlu0 %127
    %129 = vadd.xlane.f32.xlu0 %v79
    %v130 = vpop.xlane.xlu0 %129
    %131 = vadd.xlane.f32.xlu0 %v80
    %v132 = vpop.xlane.xlu0 %131
    %133 = vadd.xlane.f32.xlu0 %v81
    %v134 = vpop.xlane.xlu0 %133
    %135 = vadd.xlane.f32.xlu0 %v82
    %v136 = vpop.xlane.xlu0 %135
    %137 = vadd.xlane.f32.xlu0 %v83
    %v138 = vpop.xlane.xlu0 %137
    %139 = vadd.xlane.f32.xlu0 %v84
    %v140 = vpop.xlane.xlu0 %139
    %141 = vadd.xlane.f32.xlu0 %v85
    %v142 = vpop.xlane.xlu0 %141
    %143 = vadd.xlane.f32.xlu0 %v86
    %v144 = vpop.xlane.xlu0 %143
    %145 = vadd.xlane.f32.xlu0 %v87
    %v146 = vpop.xlane.xlu0 %145
    %147 = vadd.xlane.f32.xlu0 %v88
    %v148 = vpop.xlane.xlu0 %147
    %149 = vadd.xlane.f32.xlu0 %v89
    %v150 = vpop.xlane.xlu0 %149
    %151 = vadd.xlane.f32.xlu0 %v90
    %v152 = vpop.xlane.xlu0 %151
    %153 = vadd.xlane.f32.xlu0 %v91
    %v154 = vpop.xlane.xlu0 %153
    %155 = vadd.xlane.f32.xlu0 %v92
    %v156 = vpop.xlane.xlu0 %155
    %v157 = vmax.f32 %v94, 1e-24
    %v158 = vmax.f32 %v96, 1e-24
    %v159 = vmax.f32 %v98, 1e-24
    %v160 = vmax.f32 %v100, 1e-24
    %v161 = vmax.f32 %v102, 1e-24
    %v162 = vmax.f32 %v104, 1e-24
    %v163 = vmax.f32 %v106, 1e-24
    %v164 = vmax.f32 %v108, 1e-24
    %v165 = vmax.f32 %v110, 1e-24
    %v166 = vmax.f32 %v112, 1e-24
    %v167 = vmax.f32 %v114, 1e-24
    %v168 = vmax.f32 %v116, 1e-24
    %v169 = vmax.f32 %v118, 1e-24
    %v170 = vmax.f32 %v120, 1e-24
    %v171 = vmax.f32 %v122, 1e-24
    %v172 = vmax.f32 %v124, 1e-24
    %v173 = vmax.f32 %v126, 1e-24
    %v174 = vmax.f32 %v128, 1e-24
    %v175 = vmax.f32 %v130, 1e-24
    %v176 = vmax.f32 %v132, 1e-24
    %v177 = vmax.f32 %v134, 1e-24
    %v178 = vmax.f32 %v136, 1e-24
    %v179 = vmax.f32 %v138, 1e-24
    %v180 = vmax.f32 %v140, 1e-24
    %v181 = vmax.f32 %v142, 1e-24
    %v182 = vmax.f32 %v144, 1e-24
    %v183 = vmax.f32 %v146, 1e-24
    %v184 = vmax.f32 %v148, 1e-24
    %v185 = vmax.f32 %v150, 1e-24
    %v186 = vmax.f32 %v152, 1e-24
    %v187 = vmax.f32 %v154, 1e-24
    %v188 = vmax.f32 %v156, 1e-24
    %v189 = vrsqrt.pop %v157
    %v190 = vrsqrt.pop %v158
    %v191 = vrsqrt.pop %v159
    %v192 = vrsqrt.pop %v160
    %v193 = vrsqrt.pop %v161
    %v194 = vrsqrt.pop %v162
    %v195 = vrsqrt.pop %v163
    %v196 = vrsqrt.pop %v164
    %v197 = vrsqrt.pop %v165
    %v198 = vrsqrt.pop %v166
    %v199 = vrsqrt.pop %v167
    %v200 = vrsqrt.pop %v168
    %v201 = vrsqrt.pop %v169
    %v202 = vrsqrt.pop %v170
    %v203 = vrsqrt.pop %v171
    %v204 = vrsqrt.pop %v172
    %v205 = vrsqrt.pop %v173
    %v206 = vrsqrt.pop %v174
    %v207 = vrsqrt.pop %v175
    %v208 = vrsqrt.pop %v176
    %v209 = vrsqrt.pop %v177
    %v210 = vrsqrt.pop %v178
    %v211 = vrsqrt.pop %v179
    %v212 = vrsqrt.pop %v180
    %v213 = vrsqrt.pop %v181
    %v214 = vrsqrt.pop %v182
    %v215 = vrsqrt.pop %v183
    %v216 = vrsqrt.pop %v184
    %v217 = vrsqrt.pop %v185
    %v218 = vrsqrt.pop %v186
    %v219 = vrsqrt.pop %v187
    %v220 = vrsqrt.pop %v188
    %v221 = vmul.f32 %v189, 30.0
    %v222 = vmul.f32 %v190, 30.0
    %v223 = vmul.f32 %v191, 30.0
    %v224 = vmul.f32 %v192, 30.0
    %v225 = vmul.f32 %v193, 30.0
    %v226 = vmul.f32 %v194, 30.0
    %v227 = vmul.f32 %v195, 30.0
    %v228 = vmul.f32 %v196, 30.0
    %v229 = vmul.f32 %v197, 30.0
    %v230 = vmul.f32 %v198, 30.0
    %v231 = vmul.f32 %v199, 30.0
    %v232 = vmul.f32 %v200, 30.0
    %v233 = vmul.f32 %v201, 30.0
    %v234 = vmul.f32 %v202, 30.0
    %v235 = vmul.f32 %v203, 30.0
    %v236 = vmul.f32 %v204, 30.0
    %v237 = vmul.f32 %v205, 30.0
    %v238 = vmul.f32 %v206, 30.0
    %v239 = vmul.f32 %v207, 30.0
    %v240 = vmul.f32 %v208, 30.0
    %v241 = vmul.f32 %v209, 30.0
    %v242 = vmul.f32 %v210, 30.0
    %v243 = vmul.f32 %v211, 30.0
    %v244 = vmul.f32 %v212, 30.0
    %v245 = vmul.f32 %v213, 30.0
    %v246 = vmul.f32 %v214, 30.0
    %v247 = vmul.f32 %v215, 30.0
    %v248 = vmul.f32 %v216, 30.0
    %v249 = vmul.f32 %v217, 30.0
    %v250 = vmul.f32 %v218, 30.0
    %v251 = vmul.f32 %v219, 30.0
    %v252 = vmul.f32 %v220, 30.0
    %v253 = vmul.f32 %v29, %v221
    %v254 = vmul.f32 %v30, %v222
    %v255 = vmul.f32 %v31, %v223
    %v256 = vmul.f32 %v32, %v224
    %v257 = vmul.f32 %v33, %v225
    %v258 = vmul.f32 %v34, %v226
    %v259 = vmul.f32 %v35, %v227
    %v260 = vmul.f32 %v36, %v228
    %v261 = vmul.f32 %v37, %v229
    %v262 = vmul.f32 %v38, %v230
    %v263 = vmul.f32 %v39, %v231
    %v264 = vmul.f32 %v40, %v232
    %v265 = vmul.f32 %v41, %v233
    %v266 = vmul.f32 %v42, %v234
    %v267 = vmul.f32 %v43, %v235
    %v268 = vmul.f32 %v44, %v236
    %v269 = vmul.f32 %v45, %v237
    %v270 = vmul.f32 %v46, %v238
    %v271 = vmul.f32 %v47, %v239
    %v272 = vmul.f32 %v48, %v240
    %v273 = vmul.f32 %v49, %v241
    %v274 = vmul.f32 %v50, %v242
    %v275 = vmul.f32 %v51, %v243
    %v276 = vmul.f32 %v52, %v244
    %v277 = vmul.f32 %v53, %v245
    %v278 = vmul.f32 %v54, %v246
    %v279 = vmul.f32 %v55, %v247
    %v280 = vmul.f32 %v56, %v248
    %v281 = vmul.f32 %v57, %v249
    %v282 = vmul.f32 %v58, %v250
    %v283 = vmul.f32 %v59, %v251
    %v284 = vmul.f32 %v60, %v252
    %v285 = vld [vmem:[%s0] sm:$0xff]
    %286 = vmatprep.subr.mxu0 0.0
    %287 = vmatpush1.xpose.msra.mxu0 %v268
    %288 = vmatprep.subr.mxu0 0.0
    %289 = vmatpush1.xpose.msra.mxu0 %v267
    %290 = vmatprep.subr.mxu0 0.0
    %291 = vmatpush1.xpose.msra.mxu0 %v266
    %292 = vmatprep.subr.mxu0 0.0
    %293 = vmatpush1.xpose.msra.mxu0 %v265
    %294 = vmatprep.subr.mxu0 0.0
    %295 = vmatpush1.xpose.msra.mxu0 %v264
    %296 = vmatprep.subr.mxu0 0.0
    %297 = vmatpush1.xpose.msra.mxu0 %v263
    %298 = vmatprep.subr.mxu0 0.0
    %299 = vmatpush1.xpose.msra.mxu0 %v262
    %300 = vmatprep.subr.mxu0 0.0
    %301 = vmatpush1.xpose.msra.mxu0 %v261
    %302 = vmatprep.subr.mxu0 0.0
    %303 = vmatpush1.xpose.msra.mxu0 %v260
    %304 = vmatprep.subr.mxu0 0.0
    %305 = vmatpush1.xpose.msra.mxu0 %v259
    %306 = vmatprep.subr.mxu0 0.0
    %307 = vmatpush1.xpose.msra.mxu0 %v258
    %308 = vmatprep.subr.mxu0 0.0
    %309 = vmatpush1.xpose.msra.mxu0 %v257
    %310 = vmatprep.subr.mxu0 0.0
    %311 = vmatpush1.xpose.msra.mxu0 %v256
    %312 = vmatprep.subr.mxu0 0.0
    %313 = vmatpush1.xpose.msra.mxu0 %v255
    %314 = vmatprep.subr.mxu0 0.0
    %315 = vmatpush1.xpose.msra.mxu0 %v254
    %316 = vmatprep.subr.mxu0 0.0
    %317 = vmatpush1.xpose.msra.mxu0 %v253
    %318 = vmatprep.subr.mxu0 0.0
    %319 = vmatpush2.xpose.msra.mxu0 %v284
    %320 = vmatprep.subr.mxu0 0.0
    %321 = vmatpush2.xpose.msra.mxu0 %v283
    %322 = vmatprep.subr.mxu0 0.0
    %323 = vmatpush2.xpose.msra.mxu0 %v282
    %324 = vmatprep.subr.mxu0 0.0
    %325 = vmatpush2.xpose.msra.mxu0 %v281
    %326 = vmatprep.subr.mxu0 0.0
    %327 = vmatpush2.xpose.msra.mxu0 %v280
    %328 = vmatprep.subr.mxu0 0.0
    %329 = vmatpush2.xpose.msra.mxu0 %v279
    %330 = vmatprep.subr.mxu0 0.0
    %331 = vmatpush2.xpose.msra.mxu0 %v278
    %332 = vmatprep.subr.mxu0 0.0
    %333 = vmatpush2.xpose.msra.mxu0 %v277
    %334 = vmatprep.subr.mxu0 0.0
    %335 = vmatpush2.xpose.msra.mxu0 %v276
    %336 = vmatprep.subr.mxu0 0.0
    %337 = vmatpush2.xpose.msra.mxu0 %v275
    %338 = vmatprep.subr.mxu0 0.0
    %339 = vmatpush2.xpose.msra.mxu0 %v274
    %340 = vmatprep.subr.mxu0 0.0
    %341 = vmatpush2.xpose.msra.mxu0 %v273
    %342 = vmatprep.subr.mxu0 0.0
    %343 = vmatpush2.xpose.msra.mxu0 %v272
    %344 = vmatprep.subr.mxu0 0.0
    %345 = vmatpush2.xpose.msra.mxu0 %v271
    %346 = vmatprep.subr.mxu0 0.0
    %347 = vmatpush2.xpose.msra.mxu0 %v270
    %348 = vmatprep.subr.mxu0 0.0
    %349 = vmatpush2.xpose.msra.mxu0 %v269
    %350 = vmatprep.mubr.f32.mxu0 0.0
    %351 = vmatmul.mubr.f32.gmra.mxu0 %v285
    %v352 = vpop.f32.mrf.mxu0
    %v353 = vadd.f32 0.0, %v352
    %v354 = vpop.f32.mrf.mxu0
    %v355 = vadd.f32 0.0, %v354
    %356 = vdwg.mxu0
    %v357 = vlaneseq
    %v358 = vand.u32 %v357, 127
    %v359 = vadd.s32 %v358, 128
    %v360 = vld [vmem:[%s2] sm:$0xff]
    %361 = vset.pattern.permute.xlu0 0
    %362 = vperm.xlu0 %361, %v360
    %v363 = vpop.permute.xlu0 %362
    %vm364 = vcmp.eq.s32.totalorder %v358, %v363
    %vm365 = vcmp.eq.s32.totalorder %v359, %v363
    %v366 = vsel %vm364, 12.0, 0.0
    %v367 = vsel %vm365, 12.0, 0.0
    %v368 = vsub.f32 %v353, %v366
    %v369 = vsub.f32 %v355, %v367
    %370 = vst [vmem:[#allocation5] sm:$0xff] %v368
    %371 = vst [vmem:[#allocation5 + $0x8] sm:$0xff] %v369
    // Predicated region
    $region18: #{tpu_custom_call.1} parent=1 // pred_check
      _
    $region19: #{tpu_custom_call.1} parent=1 // pred_check_branch
      %373 = sbr.rel (0) target = $region21
    $region20: #{tpu_custom_call.1} parent=1 // pred_region
      %s375 = ssub.s32 256, 256
      %376 = vsyncadd [#allocation4], %s375
      %s378 = sshll.u32 [#allocation5], 4
      %s379 = int_to_ptr.vmem [resolvable:$true] %s378
      %381 = dma.vmem_to_hbm [thread:$0]  %s379, 256, %s3, [#allocation4]
    $region21: #{tpu_custom_call.1} parent=1 // pred_fallthru
      _
    // Predicated region
    $region22: #{tpu_custom_call.1} parent=1 // pred_check
      _
    $region23: #{tpu_custom_call.1} parent=1 // pred_check_branch
      %383 = sbr.rel (0) target = $region25
    $region24: #{tpu_custom_call.1} parent=1 // pred_region
      %384 = dma.done [#allocation4], 256
    $region25: #{tpu_custom_call.1} parent=1 // pred_fallthru
      _
    %385 = vsyncpa [#allocation3], 1
    %386 = vsyncpa [#allocation4], 1

</llo_original>
